<compile_context>
chip_gen: v7x
topology: tpu7x:2x2x1
jax: 0.10.0
libtpu: 0.0.40
codegen_flags: <defaults>
</compile_context>

<pallas_src>
import functools

import numpy as np
import jax
import jax.numpy as jnp
from jax import lax
from jax.experimental import pallas as pl
from jax.experimental.pallas import tpu as pltpu


def _cdiv(a, b):
    return (a + b - 1) // b


def _round_up(x, m):
    return _cdiv(x, m) * m


def _pos_enc_kernel(pos_ref, coef_ref, out_ref, *, d, width):
    """One grid step.

    pos_ref : (TM, nsrc)   packed positions (G original rows side by side)
    coef_ref: (nsrc, W)    coef[j, k] = 2**l(k) if output column k reads packed
                           pos column j, else 0  (exact powers of two)
    out_ref : (TM, W)      packed encoding, W = G * out_d (multiple of 128)
    """
    W = width
    tm = out_ref.shape[0]
    tm2 = tm // 2                      # tm is a multiple of 16 -> tm2 mult. of 8
    nsrc = pos_ref.shape[1]

    pos = pos_ref[...].astype(jnp.float32)      # compute always in f32
    coef = coef_ref[...]

    def angles(p):
        # ang[:, k] = 2**l(k) * p[:, src(k)]  -- exact: every column has exactly
        # one nonzero coef term and the frequency is a power of two.
        ang = p[:, 0:1] * coef[0:1, :]
        for j in range(1, nsrc):
            ang = ang + p[:, j:j + 1] * coef[j:j + 1, :]
        return ang

    ang_a = angles(pos[:tm2, :])                 # first half of the row tile
    ang_b = angles(pos[tm2:, :])                 # second half

    lane = lax.broadcasted_iota(jnp.int32, (tm2, W), 1)
    sin_col = (lane % (2 * d)) < d               # PyTorch order: [sin f | cos f] blocks of width d

    # Row-pair trick: within a row, the angle of a sin column equals the angle
    # of its cos column d lanes to the right.  Fill those "duplicate" lanes
    # with the partner row's angles so one sin() + one cos() over full-width
    # vregs covers both rows -> exactly one transcendental per output element.
    sx = jnp.sin(jnp.where(sin_col, ang_a, ang_b))   # sin cols: row a ; cos cols: row b
    cy = jnp.cos(jnp.where(sin_col, ang_b, ang_a))   # sin cols: row b ; cos cols: row a

    out_a = jnp.where(sin_col, sx, cy)

    # Row b's values sit d lanes away; rotate them back into place.  The
    # wrapped lanes are never selected (first d lanes are sin cols, last d
    # lanes are cos cols), so the circular wrap is harmless.
    sx_shl = jnp.concatenate([sx[:, d:], sx[:, :d]], axis=1)    # y[k] = sx[k + d]
    cy_shr = jnp.concatenate([cy[:, -d:], cy[:, :-d]], axis=1)  # y[k] = cy[k - d]
    out_b = jnp.where(sin_col, sx_shl, cy_shr)

    out_ref[:tm2, :] = out_a.astype(out_ref.dtype)
    out_ref[tm2:, :] = out_b.astype(out_ref.dtype)


def position_encoder(pos, output_dim, *, max_rows_per_tile=2048, out_dtype=None):
    """pos: (..., input_dim). Returns (..., input_dim * output_dim)."""
    assert output_dim % 2 == 0, "output_dim must be even (PyTorch module truncates otherwise)"
    L = output_dim // 2
    d = pos.shape[-1]
    out_d = d * 2 * L
    out_dtype = pos.dtype if out_dtype is None else out_dtype

    # Lane packing: G original rows per packed super-row so the kernel output
    # width is a multiple of 128 lanes (full vregs, unmasked stores).
    G = 128 // int(np.gcd(out_d, 128))
    W = G * out_d
    nsrc = G * d

    # Per-column coefficient table (passed as a kernel input, never captured):
    # for packed output column k: group g = k//out_d, rem = k%out_d,
    # frequency l = rem//(2d), feature c = rem%d, source column src = g*d + c.
    k = np.arange(W)
    rem = k % out_d
    l_idx = rem // (2 * d)
    src = (k // out_d) * d + (rem % d)
    coef = np.zeros((nsrc, W), dtype=np.float32)
    coef[src, k] = (2.0 ** l_idx).astype(np.float32)     # exact powers of two

    orig_shape = pos.shape
    rows = int(np.prod(orig_shape[:-1]))
    pos2d = pos.reshape(rows, d)

    srows = _cdiv(rows, G)                               # packed super-rows needed

    # Tile selection: bounded tail padding, and >=2 grid steps when there is
    # enough work so both v7x TensorCores get fed ("parallel" grid axis).
    MIN_TM = 16                                          # 2 row-halves x 8 sublanes
    n_tiles = _cdiv(srows, max_rows_per_tile)
    if n_tiles == 1 and srows >= 2 * MIN_TM:
        n_tiles = 2
    tm = _round_up(max(_cdiv(srows, n_tiles), 1), MIN_TM)
    grid = _cdiv(srows, tm)
    srows_p = grid * tm

    rows_p = srows_p * G
    if rows_p != rows:
        pos2d = jnp.pad(pos2d, ((0, rows_p - rows), (0, 0)))
    pos_packed = pos2d.reshape(srows_p, nsrc)            # free row-major reshape

    kernel = functools.partial(_pos_enc_kernel, d=d, width=W)

    n_out = srows_p * W
    cost = pl.CostEstimate(
        flops=12 * n_out,
        transcendentals=n_out,
        bytes_accessed=int(pos_packed.size) * pos_packed.dtype.itemsize
        + coef.size * 4
        + n_out * jnp.dtype(out_dtype).itemsize,
    )

    out_packed = pl.pallas_call(
        kernel,
        out_shape=jax.ShapeDtypeStruct((srows_p, W), out_dtype),
        grid_spec=pltpu.PrefetchScalarGridSpec(
            num_scalar_prefetch=0,
            grid=(grid,),
            in_specs=[
                pl.BlockSpec((tm, nsrc), lambda i: (i, 0)),
                pl.BlockSpec((nsrc, W), lambda i: (0, 0)),
            ],
            out_specs=pl.BlockSpec((tm, W), lambda i: (i, 0)),
        ),
        compiler_params=pltpu.CompilerParams(
            dimension_semantics=("parallel",),
            vmem_limit_bytes=32 * 1024 * 1024,
        ),
        cost_estimate=cost,
    )(pos_packed, jnp.asarray(coef))

    out2d = out_packed.reshape(rows_p, out_d)
    if rows_p != rows:
        out2d = out2d[:rows]
    return out2d.reshape(orig_shape[:-1] + (out_d,))


def position_encoder_ref(pos, output_dim):
    L = output_dim // 2
    parts = []
    for i in range(L):
        f = 2.0 ** i
        parts.append(jnp.sin(f * pos))
        parts.append(jnp.cos(f * pos))
    return jnp.concatenate(parts, axis=-1)


if __name__ == "__main__":
    key = jax.random.PRNGKey(0)
    k1, k2, k3 = jax.random.split(key, 3)

    # Case 1: nominal PositionEncoder(output_dim=32, input_dim=2) on (2, 8, 2).
    out_dim = 32
    pos1 = jax.random.uniform(k1, (2, 8, 2), dtype=jnp.float32)
    out1 = jax.block_until_ready(position_encoder(pos1, out_dim))
    ref1 = position_encoder_ref(pos1, out_dim)
    assert out1.shape == (2, 8, 2 * out_dim), out1.shape
    # Angles are bit-identical to the reference (power-of-two multiplies are
    # exact); small slack only for the sin/cos approximation at 2^15 * x.
    assert jnp.allclose(out1, ref1, atol=1e-4, rtol=1e-4), "mismatch vs reference (case 1)"

    # Case 2: row count not divisible by the packing/tile -> padded-tail path.
    pos2 = jax.random.uniform(k2, (3, 5, 2), dtype=jnp.float32)
    out2 = jax.block_until_ready(position_encoder(pos2, out_dim))
    ref2 = position_encoder_ref(pos2, out_dim)
    assert out2.shape == (3, 5, 2 * out_dim), out2.shape
    assert jnp.allclose(out2, ref2, atol=1e-4, rtol=1e-4), "mismatch vs reference (case 2)"

    # Case 3: multi-step grid (2 tiles), larger packing factor (G=8), small
    # frequencies -> tight tolerance.
    pos3 = jax.random.uniform(k3, (1, 300, 2), dtype=jnp.float32)
    out3 = jax.block_until_ready(position_encoder(pos3, 8))
    ref3 = position_encoder_ref(pos3, 8)
    assert out3.shape == (1, 300, 2 * 8), out3.shape
    assert jnp.allclose(out3, ref3, atol=1e-6, rtol=1e-6), "mismatch vs reference (case 3)"

    print("KERNEL_OK")
</pallas_src>

<mosaic_0001>
module attributes {stable_mosaic.version = 11 : i64} {
  func.func @_pos_enc_kernel(%arg0: i32, %arg1: memref<16x4xf32, #tpu.memory_space<vmem>>, %arg2: memref<4x128xf32, #tpu.memory_space<vmem>>, %arg3: memref<16x128xf32, #tpu.memory_space<vmem>>) attributes {dimension_semantics = [#tpu.dimension_semantics<parallel>], iteration_bounds = array<i64: 1>, scalar_prefetch = 0 : i64, scratch_operands = 0 : i64, tpu.core_type = #tpu.core_type<tc>, window_params = [{transform_indices = @transform_0, window_bounds = array<i64: 16, 4>}, {pipeline_mode = #tpu.pipeline_mode<synchronous>, transform_indices = @transform_1, window_bounds = array<i64: 4, 128>}, {transform_indices = @transform_2, window_bounds = array<i64: 16, 128>}]} {
    %c0 = arith.constant 0 : index
    %c0_0 = arith.constant 0 : index
    %0 = vector.load %arg1[%c0, %c0_0] : memref<16x4xf32, #tpu.memory_space<vmem>>, vector<16x4xf32>
    %c0_1 = arith.constant 0 : index
    %c0_2 = arith.constant 0 : index
    %1 = vector.load %arg2[%c0_1, %c0_2] : memref<4x128xf32, #tpu.memory_space<vmem>>, vector<4x128xf32>
    %2 = vector.extract_strided_slice %0 {offsets = [0, 0], sizes = [8, 4], strides = [1, 1]} : vector<16x4xf32> to vector<8x4xf32>
    %3 = vector.extract_strided_slice %2 {offsets = [0, 0], sizes = [8, 1], strides = [1, 1]} : vector<8x4xf32> to vector<8x1xf32>
    %4 = vector.extract_strided_slice %1 {offsets = [0, 0], sizes = [1, 128], strides = [1, 1]} : vector<4x128xf32> to vector<1x128xf32>
    %5 = vector.broadcast %3 : vector<8x1xf32> to vector<8x128xf32>
    %6 = vector.broadcast %4 : vector<1x128xf32> to vector<8x128xf32>
    %7 = arith.mulf %5, %6 : vector<8x128xf32>
    %8 = vector.extract_strided_slice %2 {offsets = [0, 1], sizes = [8, 1], strides = [1, 1]} : vector<8x4xf32> to vector<8x1xf32>
    %9 = vector.extract_strided_slice %1 {offsets = [1, 0], sizes = [1, 128], strides = [1, 1]} : vector<4x128xf32> to vector<1x128xf32>
    %10 = vector.broadcast %8 : vector<8x1xf32> to vector<8x128xf32>
    %11 = vector.broadcast %9 : vector<1x128xf32> to vector<8x128xf32>
    %12 = arith.mulf %10, %11 : vector<8x128xf32>
    %13 = arith.addf %7, %12 : vector<8x128xf32>
    %14 = vector.extract_strided_slice %2 {offsets = [0, 2], sizes = [8, 1], strides = [1, 1]} : vector<8x4xf32> to vector<8x1xf32>
    %15 = vector.extract_strided_slice %1 {offsets = [2, 0], sizes = [1, 128], strides = [1, 1]} : vector<4x128xf32> to vector<1x128xf32>
    %16 = vector.broadcast %14 : vector<8x1xf32> to vector<8x128xf32>
    %17 = vector.broadcast %15 : vector<1x128xf32> to vector<8x128xf32>
    %18 = arith.mulf %16, %17 : vector<8x128xf32>
    %19 = arith.addf %13, %18 : vector<8x128xf32>
    %20 = vector.extract_strided_slice %2 {offsets = [0, 3], sizes = [8, 1], strides = [1, 1]} : vector<8x4xf32> to vector<8x1xf32>
    %21 = vector.extract_strided_slice %1 {offsets = [3, 0], sizes = [1, 128], strides = [1, 1]} : vector<4x128xf32> to vector<1x128xf32>
    %22 = vector.broadcast %20 : vector<8x1xf32> to vector<8x128xf32>
    %23 = vector.broadcast %21 : vector<1x128xf32> to vector<8x128xf32>
    %24 = arith.mulf %22, %23 : vector<8x128xf32>
    %25 = arith.addf %19, %24 : vector<8x128xf32>
    %26 = vector.extract_strided_slice %0 {offsets = [8, 0], sizes = [8, 4], strides = [1, 1]} : vector<16x4xf32> to vector<8x4xf32>
    %27 = vector.extract_strided_slice %26 {offsets = [0, 0], sizes = [8, 1], strides = [1, 1]} : vector<8x4xf32> to vector<8x1xf32>
    %28 = vector.extract_strided_slice %1 {offsets = [0, 0], sizes = [1, 128], strides = [1, 1]} : vector<4x128xf32> to vector<1x128xf32>
    %29 = vector.broadcast %27 : vector<8x1xf32> to vector<8x128xf32>
    %30 = vector.broadcast %28 : vector<1x128xf32> to vector<8x128xf32>
    %31 = arith.mulf %29, %30 : vector<8x128xf32>
    %32 = vector.extract_strided_slice %26 {offsets = [0, 1], sizes = [8, 1], strides = [1, 1]} : vector<8x4xf32> to vector<8x1xf32>
    %33 = vector.extract_strided_slice %1 {offsets = [1, 0], sizes = [1, 128], strides = [1, 1]} : vector<4x128xf32> to vector<1x128xf32>
    %34 = vector.broadcast %32 : vector<8x1xf32> to vector<8x128xf32>
    %35 = vector.broadcast %33 : vector<1x128xf32> to vector<8x128xf32>
    %36 = arith.mulf %34, %35 : vector<8x128xf32>
    %37 = arith.addf %31, %36 : vector<8x128xf32>
    %38 = vector.extract_strided_slice %26 {offsets = [0, 2], sizes = [8, 1], strides = [1, 1]} : vector<8x4xf32> to vector<8x1xf32>
    %39 = vector.extract_strided_slice %1 {offsets = [2, 0], sizes = [1, 128], strides = [1, 1]} : vector<4x128xf32> to vector<1x128xf32>
    %40 = vector.broadcast %38 : vector<8x1xf32> to vector<8x128xf32>
    %41 = vector.broadcast %39 : vector<1x128xf32> to vector<8x128xf32>
    %42 = arith.mulf %40, %41 : vector<8x128xf32>
    %43 = arith.addf %37, %42 : vector<8x128xf32>
    %44 = vector.extract_strided_slice %26 {offsets = [0, 3], sizes = [8, 1], strides = [1, 1]} : vector<8x4xf32> to vector<8x1xf32>
    %45 = vector.extract_strided_slice %1 {offsets = [3, 0], sizes = [1, 128], strides = [1, 1]} : vector<4x128xf32> to vector<1x128xf32>
    %46 = vector.broadcast %44 : vector<8x1xf32> to vector<8x128xf32>
    %47 = vector.broadcast %45 : vector<1x128xf32> to vector<8x128xf32>
    %48 = arith.mulf %46, %47 : vector<8x128xf32>
    %49 = arith.addf %43, %48 : vector<8x128xf32>
    %50 = tpu.iota {dimensions = array<i32: 1>} : vector<8x128xi32>
    %c4_i32 = arith.constant 4 : i32
    %c0_i32 = arith.constant 0 : i32
    %51 = arith.cmpi eq, %c4_i32, %c0_i32 : i32
    %c1_i32 = arith.constant 1 : i32
    %52 = arith.select %51, %c1_i32, %c4_i32 : i32
    %53 = vector.broadcast %52 : i32 to vector<8x128xi32>
    %54 = arith.remsi %50, %53 : vector<8x128xi32>
    %c0_i32_3 = arith.constant 0 : i32
    %55 = vector.broadcast %c0_i32_3 : i32 to vector<8x128xi32>
    %56 = arith.cmpi ne, %54, %55 : vector<8x128xi32>
    %c0_i32_4 = arith.constant 0 : i32
    %57 = vector.broadcast %c0_i32_4 : i32 to vector<8x128xi32>
    %58 = arith.cmpi slt, %54, %57 : vector<8x128xi32>
    %c0_i32_5 = arith.constant 0 : i32
    %59 = arith.cmpi slt, %52, %c0_i32_5 : i32
    %60 = vector.broadcast %59 : i1 to vector<8x128xi1>
    %61 = vector.broadcast %60 : vector<8x128xi1> to vector<8x128xi1>
    %62 = arith.xori %58, %61 : vector<8x128xi1>
    %63 = arith.andi %62, %56 : vector<8x128xi1>
    %64 = vector.broadcast %52 : i32 to vector<8x128xi32>
    %65 = arith.addi %54, %64 : vector<8x128xi32>
    %66 = arith.select %63, %65, %54 : vector<8x128xi1>, vector<8x128xi32>
    %c2_i32 = arith.constant 2 : i32
    %67 = vector.broadcast %c2_i32 : i32 to vector<8x128xi32>
    %68 = arith.cmpi slt, %66, %67 : vector<8x128xi32>
    %69 = arith.select %68, %25, %49 : vector<8x128xi1>, vector<8x128xf32>
    %70 = math.sin %69 : vector<8x128xf32>
    %71 = arith.select %68, %49, %25 : vector<8x128xi1>, vector<8x128xf32>
    %72 = math.cos %71 : vector<8x128xf32>
    %73 = arith.select %68, %70, %72 : vector<8x128xi1>, vector<8x128xf32>
    %74 = vector.extract_strided_slice %70 {offsets = [0, 2], sizes = [8, 126], strides = [1, 1]} : vector<8x128xf32> to vector<8x126xf32>
    %75 = vector.extract_strided_slice %70 {offsets = [0, 0], sizes = [8, 2], strides = [1, 1]} : vector<8x128xf32> to vector<8x2xf32>
    %76 = tpu.concatenate %74, %75 in 1 : vector<8x126xf32>, vector<8x2xf32> -> vector<8x128xf32>
    %77 = vector.extract_strided_slice %72 {offsets = [0, 126], sizes = [8, 2], strides = [1, 1]} : vector<8x128xf32> to vector<8x2xf32>
    %78 = vector.extract_strided_slice %72 {offsets = [0, 0], sizes = [8, 126], strides = [1, 1]} : vector<8x128xf32> to vector<8x126xf32>
    %79 = tpu.concatenate %77, %78 in 1 : vector<8x2xf32>, vector<8x126xf32> -> vector<8x128xf32>
    %80 = arith.select %68, %76, %79 : vector<8x128xi1>, vector<8x128xf32>
    %c0_6 = arith.constant 0 : index
    %c0_7 = arith.constant 0 : index
    %81 = vector.load %arg3[%c0_6, %c0_7] : memref<16x128xf32, #tpu.memory_space<vmem>>, vector<8x128xf32>
    tpu.vector_store %arg3[%c0_6, %c0_7], %73 {strides = array<i32>} : memref<16x128xf32, #tpu.memory_space<vmem>>, vector<8x128xf32>,
    %c8 = arith.constant 8 : index
    %c0_8 = arith.constant 0 : index
    %82 = vector.load %arg3[%c8, %c0_8] : memref<16x128xf32, #tpu.memory_space<vmem>>, vector<8x128xf32>
    tpu.vector_store %arg3[%c8, %c0_8], %80 {strides = array<i32>} : memref<16x128xf32, #tpu.memory_space<vmem>>, vector<8x128xf32>,
    return
  }
  func.func @transform_0(%arg0: i32) -> (i32, i32) {
    %c0_i32 = arith.constant 0 : i32
    %c0_i32_0 = arith.constant 0 : i32
    return %arg0, %c0_i32 : i32, i32
  }
  func.func @transform_1(%arg0: i32) -> (i32, i32) {
    %c0_i32 = arith.constant 0 : i32
    %c0_i32_0 = arith.constant 0 : i32
    %c0_i32_1 = arith.constant 0 : i32
    return %c0_i32, %c0_i32_0 : i32, i32
  }
  func.func @transform_2(%arg0: i32) -> (i32, i32) {
    %c0_i32 = arith.constant 0 : i32
    %c0_i32_0 = arith.constant 0 : i32
    return %arg0, %c0_i32 : i32, i32
  }
}

</mosaic_0001>

<llo_original>
// kernel: tpu_custom_call.1
$region0: #{tpu_custom_call.1}
  #allocation0 [shape = 'u32[]', space=smem, size = 0x4, offset = 0x4, fixed_abs, tag = 'smem constant byte address 0x4 - core index']
  #allocation1 [shape = 'u32[144,128]{1,0:T(1,128)}', space=vmem, size = 0x12000, scoped, tag = 'internal scratch']
  %s0 = inlined_call_operand.vmem [shape: f32[16,4], index: 0, kind: input, shape index: {}]
  %s1 = inlined_call_operand.vmem [shape: f32[4,128], index: 1, kind: input, shape index: {}]
  %s2 = inlined_call_operand.hbm [shape: f32[16,128], index: 2, kind: output, shape index: {}]
  %s3 = sld [smem:[#allocation0]]
  $region18: #{tpu_custom_call.1} parent=0
    _
  %s5 = ssub.s32 1, %s3
  %s6 = scalar_select 0, %s5, %s3
  $region1: #{tpu_custom_call.1} parent=0
    #allocation2 [shape = 'u8[8192]{0}', space=vmem, size = 0x2000, scoped, tag = 'output window, operand 0, single buffered']
    #allocation3 [shape = 's32[1]{0}', space=sflag, size = 0x4, scoped, tag = 'scoped memory for tpu_custom_call.1']
    %7 = vsyncpa [#allocation3], 0
    // Predicated region
    $region2: #{tpu_custom_call.1} parent=1 // pred_check
      _
    $region3: #{tpu_custom_call.1} parent=1 // pred_check_branch
      %9 = sbr.rel (0) target = $region5
    $region4: #{tpu_custom_call.1} parent=1 // pred_region
      _
    $region5: #{tpu_custom_call.1} parent=1 // pred_fallthru
      _
    // Predicated region
    $region6: #{tpu_custom_call.1} parent=1 // pred_check
      _
    $region7: #{tpu_custom_call.1} parent=1 // pred_check_branch
      %11 = sbr.rel (0) target = $region9
    $region8: #{tpu_custom_call.1} parent=1 // pred_region
      _
    $region9: #{tpu_custom_call.1} parent=1 // pred_fallthru
      _
    %v12 = vld [vmem:[%s0] sm:$0xff]
    %v13 = vld [vmem:[%s0 + $0x8] sm:$0xff]
    %v14 = vld [vmem:[%s1] sm:$0xf]
    %16 = vset.pattern.permute.xlu0 0
    %17 = vperm.xlu0 %16, %v12
    %v18 = vpop.permute.xlu0 %17
    %v20 = vlaneseq
    %v21 = vshrl.u32 %v20, 7
    %v22 = vsub.s32 0, %v21
    %v23 = vrot.slane %v14, %v22
    %v24 = vmul.f32 %v18, %v23
    %25 = vset.pattern.permute.xlu0 1
    %26 = vperm.xlu0 %25, %v12
    %v27 = vpop.permute.xlu0 %26
    %v29 = vlaneseq
    %v30 = vshrl.u32 %v29, 7
    %v31 = vsub.s32 1, %v30
    %v32 = vrot.slane %v14, %v31
    %v33 = vmul.f32 %v27, %v32
    %v34 = vadd.f32 %v24, %v33
    %35 = vset.pattern.permute.xlu0 2
    %36 = vperm.xlu0 %35, %v12
    %v37 = vpop.permute.xlu0 %36
    %v39 = vlaneseq
    %v40 = vshrl.u32 %v39, 7
    %v41 = vsub.s32 2, %v40
    %v42 = vrot.slane %v14, %v41
    %v43 = vmul.f32 %v37, %v42
    %v44 = vadd.f32 %v34, %v43
    %45 = vset.pattern.permute.xlu0 3
    %46 = vperm.xlu0 %45, %v12
    %v47 = vpop.permute.xlu0 %46
    %v49 = vlaneseq
    %v50 = vshrl.u32 %v49, 7
    %v51 = vsub.s32 3, %v50
    %v52 = vrot.slane %v14, %v51
    %v53 = vmul.f32 %v47, %v52
    %v54 = vadd.f32 %v44, %v53
    %56 = vset.pattern.permute.xlu0 0
    %57 = vperm.xlu0 %56, %v13
    %v58 = vpop.permute.xlu0 %57
    %v60 = vmul.f32 %v58, %v23
    %61 = vset.pattern.permute.xlu0 1
    %62 = vperm.xlu0 %61, %v13
    %v63 = vpop.permute.xlu0 %62
    %v65 = vmul.f32 %v63, %v32
    %v66 = vadd.f32 %v60, %v65
    %67 = vset.pattern.permute.xlu0 2
    %68 = vperm.xlu0 %67, %v13
    %v69 = vpop.permute.xlu0 %68
    %v71 = vmul.f32 %v69, %v42
    %v72 = vadd.f32 %v66, %v71
    %73 = vset.pattern.permute.xlu0 3
    %74 = vperm.xlu0 %73, %v13
    %v75 = vpop.permute.xlu0 %74
    %v77 = vmul.f32 %v75, %v52
    %v78 = vadd.f32 %v72, %v77
    %v79 = vlaneseq
    %v80 = vand.u32 %v79, 127
    %vm81 = vcmp.lt.s32.totalorder %v80, 0
    %v82 = vsub.s32 0, %v80
    %v83 = vsel %vm81, %v82, %v80
    %v84 = vshrl.u32 %v83, 2
    %v85 = vand.u32 %v83, 3
    %v86 = vsub.s32 0, %v85
    %v87 = vsel %vm81, %v86, %v85
    %vm88 = vcmp.ne.s32.totalorder %v87, 0
    %vm89 = vcmp.lt.s32.totalorder %v87, 0
    %vm90 = vmand %vm89, %vm88
    %v91 = vadd.s32 %v87, 4
    %v92 = vsel %vm90, %v91, %v87
    %vm93 = vcmp.lt.s32.totalorder %v92, 2
    %v94 = vsel %vm93, %v54, %v78
    %v95 = vand.u32 2147483647, %v94
    %vm96 = vcmp.le.f32.partialorder %v95, 0.7853982
    %vm97 = vcmp.lt.s32.totalorder %v94, 0
    %v98 = vand.u32 %v94, 2139095040
    %v99 = vshrl.u32 %v98, 23
    %v100 = vsub.s32 %v99, 127
    %v101 = vand.u32 2147483647, %v94
    %v102 = vand.u32 %v101, 8388607
    %v103 = vor.u32 %v102, 8388608
    %v104 = vsub.s32 0, %v103
    %v105 = vadd.s32 %v100, 1
    %vm106 = vcmp.gt.s32.totalorder %v105, 0
    %v107 = vsel %vm106, %v105, 0
    %v108 = vshrl.u32 %v107, 5
    %v109 = vand.u32 %v107, 31
    %v110 = vsub.s32 32, %v109
    %v111 = vshrl.u32 683565275, %v110
    %v112 = vshll.u32 683565275, %v109
    %v113 = vshrl.u32 2475754826, %v110
    %v114 = vor.u32 %v112, %v113
    %v115 = vshll.u32 2475754826, %v109
    %v116 = vshrl.u32 2131351028, %v110
    %v117 = vor.u32 %v115, %v116
    %v118 = vshll.u32 2131351028, %v109
    %v119 = vshrl.u32 2102212464, %v110
    %v120 = vor.u32 %v118, %v119
    %v121 = vshll.u32 2102212464, %v109
    %v122 = vshrl.u32 920167782, %v110
    %v123 = vor.u32 %v121, %v122
    %v124 = vshll.u32 920167782, %v109
    %v125 = vshrl.u32 1326507024, %v110
    %v126 = vor.u32 %v124, %v125
    %vm127 = vcmp.lt.s32.totalorder %v108, 1
    %vm128 = vcmp.lt.s32.totalorder %v108, 2
    %vm129 = vcmp.lt.s32.totalorder %v108, 3
    %vm130 = vcmp.lt.s32.totalorder %v108, 4
    %v131 = vsel %vm127, %v111, %v114
    %v132 = vsel %vm130, %v120, 2102212464
    %v133 = vsel %vm129, %v117, %v132
    %v134 = vsel %vm128, %v131, %v133
    %v135 = vsel %vm127, %v114, %v117
    %v136 = vsel %vm130, %v123, 920167782
    %v137 = vsel %vm129, %v120, %v136
    %v138 = vsel %vm128, %v135, %v137
    %v139 = vsel %vm127, %v117, %v120
    %v140 = vsel %vm130, %v126, 1326507024
    %v141 = vsel %vm129, %v123, %v140
    %v142 = vsel %vm128, %v139, %v141
    %v143 = vshll.u32 %v103, 8
    %v144 = vmul.u32.u64.compose %v143, %v142
    %v145 = vextract.low.u32 %v144
    %v146 = vextract.high.u32 %v144
    %v147 = vmul.u32.u64.compose %v143, %v138
    %v148 = vextract.low.u32 %v147
    %v149 = vextract.high.u32 %v147
    %v150 = vmul.u32 %v143, %v134
    %v151 = vadd.s32 %v146, %v148
    %vm152 = vc.u32 %v146, %v148
    %v153 = vadd.s32 %v149, 1
    %v154 = vsel %vm152, %v153, %v149
    %v155 = vadd.s32 %v150, %v154
    %v156 = vadd.s32 %v155, 536870912
    %v157 = vshrl.u32 %v156, 30
    %v158 = vshll.u32 %v157, 30
    %v159 = vsub.s32 %v155, %v158
    %vm160 = vcmp.lt.s32.totalorder %v159, 0
    %v161 = vsub.s32 0, %v159
    %v162 = vsel %vm160, %v161, %v159
    %v163 = vclz %v162
    %v164 = vsub.s32 %v163, 2
    %vm165 = vcmp.gt.s32.totalorder 0, %v164
    %v166 = vsel %vm165, 0, %v164
    %v167 = vsub.s32 32, %v166
    %v168 = vshll.u32 %v159, %v166
    %v169 = vshrl.u32 %v151, %v167
    %v170 = vor.u32 %v168, %v169
    %v171 = vsub.s32 4294967266, %v166
    %v172 = vadd.s32 %v171, 127
    %v173 = vshll.u32 %v172, 23
    %v174 = vor.u32 4788187, %v173
    %v175 = vand.u32 2147483647, %v174
    %v177 = vcvt.s32.f32 %v170
    %v178 = vmul.f32 %v177, %v175
    %v179 = vxor.u32 %v178, 2147483648
    %v180 = vsel %vm97, %v179, %v178
    %v181 = vsub.s32 4, %v157
    %v182 = vsel %vm97, %v181, %v157
    %v183 = vsel %vm96, %v94, %v180
    %v184 = vsel %vm96, 0, %v182
    %v185 = vcosq.f32.pop %v183
    %v186 = vsinq.f32.pop %v183
    %vm187 = vweird.f32 %v94
    %v188 = vadd.s32 %v184, 3
    %v189 = vand.u32 %v188, 3
    %vm190 = vcmp.lt.s32.totalorder %v189, 2
    %vm191 = vcmp.eq.s32.totalorder %v189, 0
    %v192 = vxor.u32 %v186, 2147483648
    %v193 = vsel %vm191, %v185, %v192
    %vm194 = vcmp.eq.s32.totalorder %v189, 2
    %v195 = vxor.u32 %v185, 2147483648
    %v196 = vsel %vm194, %v195, %v186
    %v197 = vsel %vm190, %v193, %v196
    %v198 = vsel %vm187, nan, %v197
    %v199 = vsel %vm93, %v78, %v54
    %v200 = vand.u32 2147483647, %v199
    %vm201 = vcmp.le.f32.partialorder %v200, 0.7853982
    %vm202 = vcmp.lt.s32.totalorder %v199, 0
    %v203 = vand.u32 %v199, 2139095040
    %v204 = vshrl.u32 %v203, 23
    %v205 = vsub.s32 %v204, 127
    %v206 = vand.u32 2147483647, %v199
    %v207 = vand.u32 %v206, 8388607
    %v208 = vor.u32 %v207, 8388608
    %v209 = vsub.s32 0, %v208
    %v210 = vadd.s32 %v205, 1
    %vm211 = vcmp.gt.s32.totalorder %v210, 0
    %v212 = vsel %vm211, %v210, 0
    %v213 = vshrl.u32 %v212, 5
    %v214 = vand.u32 %v212, 31
    %v215 = vsub.s32 32, %v214
    %v216 = vshrl.u32 683565275, %v215
    %v217 = vshll.u32 683565275, %v214
    %v218 = vshrl.u32 2475754826, %v215
    %v219 = vor.u32 %v217, %v218
    %v220 = vshll.u32 2475754826, %v214
    %v221 = vshrl.u32 2131351028, %v215
    %v222 = vor.u32 %v220, %v221
    %v223 = vshll.u32 2131351028, %v214
    %v224 = vshrl.u32 2102212464, %v215
    %v225 = vor.u32 %v223, %v224
    %v226 = vshll.u32 2102212464, %v214
    %v227 = vshrl.u32 920167782, %v215
    %v228 = vor.u32 %v226, %v227
    %v229 = vshll.u32 920167782, %v214
    %v230 = vshrl.u32 1326507024, %v215
    %v231 = vor.u32 %v229, %v230
    %vm232 = vcmp.lt.s32.totalorder %v213, 1
    %vm233 = vcmp.lt.s32.totalorder %v213, 2
    %vm234 = vcmp.lt.s32.totalorder %v213, 3
    %vm235 = vcmp.lt.s32.totalorder %v213, 4
    %v236 = vsel %vm232, %v216, %v219
    %v237 = vsel %vm235, %v225, 2102212464
    %v238 = vsel %vm234, %v222, %v237
    %v239 = vsel %vm233, %v236, %v238
    %v240 = vsel %vm232, %v219, %v222
    %v241 = vsel %vm235, %v228, 920167782
    %v242 = vsel %vm234, %v225, %v241
    %v243 = vsel %vm233, %v240, %v242
    %v244 = vsel %vm232, %v222, %v225
    %v245 = vsel %vm235, %v231, 1326507024
    %v246 = vsel %vm234, %v228, %v245
    %v247 = vsel %vm233, %v244, %v246
    %v248 = vshll.u32 %v208, 8
    %v249 = vmul.u32.u64.compose %v248, %v247
    %v250 = vextract.low.u32 %v249
    %v251 = vextract.high.u32 %v249
    %v252 = vmul.u32.u64.compose %v248, %v243
    %v253 = vextract.low.u32 %v252
    %v254 = vextract.high.u32 %v252
    %v255 = vmul.u32 %v248, %v239
    %v256 = vadd.s32 %v251, %v253
    %vm257 = vc.u32 %v251, %v253
    %v258 = vadd.s32 %v254, 1
    %v259 = vsel %vm257, %v258, %v254
    %v260 = vadd.s32 %v255, %v259
    %v261 = vadd.s32 %v260, 536870912
    %v262 = vshrl.u32 %v261, 30
    %v263 = vshll.u32 %v262, 30
    %v264 = vsub.s32 %v260, %v263
    %vm265 = vcmp.lt.s32.totalorder %v264, 0
    %v266 = vsub.s32 0, %v264
    %v267 = vsel %vm265, %v266, %v264
    %v268 = vclz %v267
    %v269 = vsub.s32 %v268, 2
    %vm270 = vcmp.gt.s32.totalorder 0, %v269
    %v271 = vsel %vm270, 0, %v269
    %v272 = vsub.s32 32, %v271
    %v273 = vshll.u32 %v264, %v271
    %v274 = vshrl.u32 %v256, %v272
    %v275 = vor.u32 %v273, %v274
    %v276 = vsub.s32 4294967266, %v271
    %v277 = vadd.s32 %v276, 127
    %v278 = vshll.u32 %v277, 23
    %v279 = vor.u32 4788187, %v278
    %v280 = vand.u32 2147483647, %v279
    %v282 = vcvt.s32.f32 %v275
    %v283 = vmul.f32 %v282, %v280
    %v284 = vxor.u32 %v283, 2147483648
    %v285 = vsel %vm202, %v284, %v283
    %v286 = vsub.s32 4, %v262
    %v287 = vsel %vm202, %v286, %v262
    %v288 = vsel %vm201, %v199, %v285
    %v289 = vsel %vm201, 0, %v287
    %v290 = vcosq.f32.pop %v288
    %v291 = vsinq.f32.pop %v288
    %vm292 = vweird.f32 %v199
    %v293 = vand.u32 %v289, 3
    %vm294 = vcmp.lt.s32.totalorder %v293, 2
    %vm295 = vcmp.eq.s32.totalorder %v293, 0
    %v296 = vxor.u32 %v291, 2147483648
    %v297 = vsel %vm295, %v290, %v296
    %vm298 = vcmp.eq.s32.totalorder %v293, 2
    %v299 = vxor.u32 %v290, 2147483648
    %v300 = vsel %vm298, %v299, %v291
    %v301 = vsel %vm294, %v297, %v300
    %v302 = vsel %vm292, nan, %v301
    %v303 = vsel %vm93, %v198, %v302
    %305 = vrot.lane.b32.xlu0 %v198, 126
    %v306 = vpop.permute.xlu0 %305
    %309 = vrot.lane.b32.xlu0 %v302, 2
    %v310 = vpop.permute.xlu0 %309
    %v312 = vsel %vm93, %v306, %v310
    %313 = vst [vmem:[#allocation2] sm:$0xff] %v303
    %314 = vst [vmem:[#allocation2 + $0x8] sm:$0xff] %v312
    // Predicated region
    $region10: #{tpu_custom_call.1} parent=1 // pred_check
      _
    $region11: #{tpu_custom_call.1} parent=1 // pred_check_branch
      %316 = sbr.rel (0) target = $region13
    $region12: #{tpu_custom_call.1} parent=1 // pred_region
      %s318 = ssub.s32 256, 256
      %319 = vsyncadd [#allocation3], %s318
      %s320 = sshll.u32 [#allocation2], 4
      %s321 = int_to_ptr.vmem [resolvable:$true] %s320
      %326 = dma.vmem_to_hbm [thread:$0]  %s321, 256, %s2, [#allocation3], 128, 128, 8
    $region13: #{tpu_custom_call.1} parent=1 // pred_fallthru
      _
    // Predicated region
    $region14: #{tpu_custom_call.1} parent=1 // pred_check
      _
    $region15: #{tpu_custom_call.1} parent=1 // pred_check_branch
      %328 = sbr.rel (0) target = $region17
    $region16: #{tpu_custom_call.1} parent=1 // pred_region
      %329 = dma.done [#allocation3], 256
    $region17: #{tpu_custom_call.1} parent=1 // pred_fallthru
      _
    %330 = vsyncpa [#allocation3], 1

</llo_original>
